<compile_context>
chip_gen: v7x
topology: tpu7x:2x2x1
jax: 0.10.0
libtpu: 0.0.40
codegen_flags: <defaults>
</compile_context>

<pallas_src>
import functools
import math

import jax
import jax.numpy as jnp
from jax import lax
from jax.experimental import pallas as pl
from jax.experimental.pallas import tpu as pltpu

LANE = 128


def _round_up(n, m):
    return ((n + m - 1) // m) * m


def mdn_fused_kernel(x_ref, w_ref, b_ref, out_ref, *, g, gd, exp_cols):
    """(TILE_B, K)bf16 @ (K, NPAD)bf16 -> f32 acc, + f32 bias, masked epilogue.

    Fused-output column layout (contiguous heads, single pad at the end):
      [0, g)           pi logits  -> masked softmax over cols < g
      [g, g+gd)        sigma lin  -> exp
      [g+gd, g+2*gd)   mu lin     -> identity
      [g+2*gd, NPAD)   zero pad   -> cropped in the wrapper
    exp_cols = round_up(g+gd, 128): only this leading lane block goes through
    the exp/softmax path; trailing mu/pad lanes are a pure identity copy.
    """
    y = jnp.dot(x_ref[...], w_ref[...], preferred_element_type=jnp.float32)
    y = y + b_ref[...]

    ylow = y[:, :exp_cols]
    col = lax.broadcasted_iota(jnp.int32, ylow.shape, 1)
    pi_mask = col < g
    sig_mask = (col >= g) & (col < g + gd)

    # Numerically stable masked softmax fused with the sigma exp: shift only
    # the pi lanes by their row max, exp the whole block ONCE (EUP), then
    # select per-head results (non-selected lanes never leak through where).
    m = jnp.max(jnp.where(pi_mask, ylow, -jnp.inf), axis=-1, keepdims=True)
    e = jnp.exp(jnp.where(pi_mask, ylow - m, ylow))
    s = jnp.sum(jnp.where(pi_mask, e, 0.0), axis=-1, keepdims=True)
    inv = pl.reciprocal(s, approx=True)
    inv = inv * (2.0 - s * inv)               # one Newton step -> ~exact 1/s
    out_ref[:, :exp_cols] = jnp.where(
        pi_mask, e * inv, jnp.where(sig_mask, e, ylow))

    if exp_cols < out_ref.shape[1]:           # static branch: leftover mu/pad
        out_ref[:, exp_cols:] = y[:, exp_cols:]


def _pack_params(params, input_dim, G, D):
    """Concatenate pi|sigma|mu contiguously, pad the COMBINED width to 128."""
    wpi, bpi, wsig, bsig, wmu, bmu = params
    gd = G * D
    n_real = G + 2 * gd
    npad = _round_up(n_real, LANE)

    wcat = jnp.zeros((input_dim, npad), jnp.float32)
    wcat = wcat.at[:, :G].set(wpi)
    wcat = wcat.at[:, G:G + gd].set(wsig)
    wcat = wcat.at[:, G + gd:n_real].set(wmu)

    bcat = jnp.zeros((1, npad), jnp.float32)
    bcat = bcat.at[:, :G].set(bpi)
    bcat = bcat.at[:, G:G + gd].set(bsig)
    bcat = bcat.at[:, G + gd:n_real].set(bmu)

    # bf16 weights: ~2-3x MXU throughput, half the resident VMEM / DMA bytes.
    return wcat.astype(jnp.bfloat16), bcat, npad


def _vmem_capacity_bytes():
    try:
        return int(pltpu.get_tpu_info().vmem_capacity_bytes)
    except Exception:
        return 64 * 1024 * 1024        # v7x per-TC size: safe lower bound


def _choose_tile_b(B, input_dim, npad, budget_bytes):
    """Largest power-of-two batch tile whose double-buffered x (bf16) and
    out (f32) rows fit the generation-aware VMEM budget."""
    b8 = _round_up(B, 8)
    per_row = 2 * input_dim * 2 + 2 * npad * 4
    tile = 1024
    while tile > 8 and tile * per_row > budget_bytes:
        tile //= 2
    if b8 <= tile:
        tile = b8                       # single grid step
    return tile


def mixture_density_decoder(x, params, num_gaussians, output_dim):
    """x: (B, input_dim) float32. Returns (pi, mu, sigma) like the PyTorch module."""
    B, input_dim = x.shape
    G, D = num_gaussians, output_dim
    gd = G * D

    wcat, bcat, NPAD = _pack_params(params, input_dim, G, D)
    exp_cols = min(_round_up(G + gd, LANE), NPAD)

    # Generation-aware tiling: subtract single-buffered resident weight/bias
    # bytes from half the physical VMEM before sizing the batch tile.
    cap = _vmem_capacity_bytes()
    resident = input_dim * NPAD * 2 + 8 * NPAD * 4
    budget = max(8 << 20, cap // 2 - resident)
    tile_b = _choose_tile_b(B, input_dim, NPAD, budget)

    Bp = _round_up(B, tile_b)
    xb = x.astype(jnp.bfloat16)
    if Bp != B:
        xb = jnp.pad(xb, ((0, Bp - B), (0, 0)))
    grid = (Bp // tile_b,)

    est = resident + tile_b * (2 * input_dim * 2 + 2 * NPAD * 4)
    vmem_limit = int(min(max(est + (4 << 20), 16 << 20), cap - (8 << 20)))

    # TODO(synk): for very large input_dim on v7x, add a second grid axis over
    # NPAD column blocks so only a weight slice is VMEM-resident at a time.
    # TODO(synk): if an xprof profile shows one idle TensorCore on v7x, switch
    # the batch axis to pltpu.CORE_PARALLEL (plain "parallel" kept for now).
    out = pl.pallas_call(
        functools.partial(mdn_fused_kernel, g=G, gd=gd, exp_cols=exp_cols),
        out_shape=jax.ShapeDtypeStruct((Bp, NPAD), jnp.float32),
        grid_spec=pltpu.PrefetchScalarGridSpec(
            num_scalar_prefetch=0,
            grid=grid,
            in_specs=[
                pl.BlockSpec((tile_b, input_dim), lambda i: (i, 0)),   # x tile
                pl.BlockSpec((input_dim, NPAD), lambda i: (0, 0),      # resident W
                             pipeline_mode=pl.Buffered(1)),
                pl.BlockSpec((1, NPAD), lambda i: (0, 0),              # resident bias
                             pipeline_mode=pl.Buffered(1)),
            ],
            out_specs=pl.BlockSpec((tile_b, NPAD), lambda i: (i, 0)),  # lane-dense slab
        ),
        compiler_params=pltpu.CompilerParams(
            dimension_semantics=("parallel",),
            vmem_limit_bytes=vmem_limit,
        ),
    )(xb, wcat, bcat)

    out = out[:B]
    pi = out[:, :G]
    sigma = out[:, G:G + gd].reshape(B, G, D)
    mu = out[:, G + gd:G + 2 * gd].reshape(B, G, D)
    return pi, mu, sigma


def init_params(key, input_dim, num_gaussians, output_dim):
    """Deterministic parameter init mirroring the PyTorch module's __init__.

    - pi Linear:    weight & bias ~ U(-1/sqrt(in), 1/sqrt(in))   (PyTorch default)
    - sigma Linear: weight = 0 (nn.init.zeros_), bias ~ U(-k, k)
    - mu Linear:    weight ~ N(0, 1) (nn.init.normal_), bias ~ U(-k, k)
    Weights are returned transposed to (input_dim, out_features); biases (1, out).
    """
    G, D = num_gaussians, output_dim
    k = 1.0 / math.sqrt(input_dim)
    k_pi, k_bpi, k_bsig, k_mu, k_bmu = jax.random.split(key, 5)

    wpi = jax.random.uniform(k_pi, (input_dim, G), jnp.float32, -k, k)
    bpi = jax.random.uniform(k_bpi, (1, G), jnp.float32, -k, k)

    wsig = jnp.zeros((input_dim, G * D), jnp.float32)
    bsig = jax.random.uniform(k_bsig, (1, G * D), jnp.float32, -k, k)

    wmu = jax.random.normal(k_mu, (input_dim, G * D), jnp.float32)
    bmu = jax.random.uniform(k_bmu, (1, G * D), jnp.float32, -k, k)

    return wpi, bpi, wsig, bsig, wmu, bmu


def _reference(x, params, G, D, matmul_dtype=jnp.float32):
    """Pure-JAX reference.  matmul_dtype=bfloat16 simulates the kernel's
    bf16-input matmul (f32 accumulate) for a tight structural check."""
    wpi, bpi, wsig, bsig, wmu, bmu = params
    xd = x.astype(matmul_dtype)

    def mm(w):
        return jnp.dot(xd, w.astype(matmul_dtype),
                       preferred_element_type=jnp.float32)

    pi = jax.nn.softmax(mm(wpi) + bpi, axis=1)
    sigma = jnp.exp(mm(wsig) + bsig).reshape(-1, G, D)
    mu = (mm(wmu) + bmu).reshape(-1, G, D)
    return pi, mu, sigma


if __name__ == "__main__":
    B, INPUT_DIM, NUM_GAUSSIANS, OUTPUT_DIM = 8, 32, 2, 2

    key = jax.random.PRNGKey(0)
    k_x, k_p = jax.random.split(key)
    x = jax.random.normal(k_x, (B, INPUT_DIM), jnp.float32)
    params = init_params(k_p, INPUT_DIM, NUM_GAUSSIANS, OUTPUT_DIM)

    pi, mu, sigma = mixture_density_decoder(x, params, NUM_GAUSSIANS, OUTPUT_DIM)
    jax.block_until_ready((pi, mu, sigma))

    assert pi.shape == (B, NUM_GAUSSIANS)
    assert mu.shape == (B, NUM_GAUSSIANS, OUTPUT_DIM)
    assert sigma.shape == (B, NUM_GAUSSIANS, OUTPUT_DIM)

    # (1) tight structural check vs a bf16-matmul-simulating reference
    pi_q, mu_q, sigma_q = _reference(x, params, NUM_GAUSSIANS, OUTPUT_DIM,
                                     matmul_dtype=jnp.bfloat16)
    assert jnp.allclose(pi, pi_q, atol=1e-4, rtol=1e-4)
    assert jnp.allclose(sigma, sigma_q, atol=1e-4, rtol=1e-4)
    assert jnp.allclose(mu, mu_q, atol=1e-4, rtol=1e-4)

    # (2) check vs the true f32 module semantics; mu tolerance reflects the
    #     bf16 input quantization of N(0,1) weights (not kernel error).
    pi_r, mu_r, sigma_r = _reference(x, params, NUM_GAUSSIANS, OUTPUT_DIM)
    assert jnp.allclose(pi, pi_r, atol=5e-3)
    assert jnp.allclose(sigma, sigma_r, atol=1e-4, rtol=1e-4)
    assert jnp.allclose(mu, mu_r, atol=2e-1, rtol=2e-2)

    # pi rows should sum to ~1 exactly (Newton-refined reciprocal)
    assert jnp.allclose(jnp.sum(pi, axis=1), jnp.ones((B,)), atol=1e-5)

    print("KERNEL_OK")
</pallas_src>

<mosaic_0001>
module attributes {stable_mosaic.version = 11 : i64} {
  func.func @mdn_fused_kernel(%arg0: i32, %arg1: memref<8x32xbf16, #tpu.memory_space<vmem>>, %arg2: memref<32x128xbf16, #tpu.memory_space<vmem>>, %arg3: memref<1x128xf32, #tpu.memory_space<vmem>>, %arg4: memref<8x128xf32, #tpu.memory_space<vmem>>) attributes {dimension_semantics = [#tpu.dimension_semantics<parallel>], iteration_bounds = array<i64: 1>, scalar_prefetch = 0 : i64, scratch_operands = 0 : i64, tpu.core_type = #tpu.core_type<tc>, window_params = [{transform_indices = @transform_0, window_bounds = array<i64: 8, 32>}, {pipeline_mode = #tpu.pipeline_mode<synchronous>, transform_indices = @transform_1, window_bounds = array<i64: 32, 128>}, {pipeline_mode = #tpu.pipeline_mode<synchronous>, transform_indices = @transform_2, window_bounds = array<i64: 1, 128>}, {transform_indices = @transform_3, window_bounds = array<i64: 8, 128>}]} {
    %c0 = arith.constant 0 : index
    %c0_0 = arith.constant 0 : index
    %0 = vector.load %arg1[%c0, %c0_0] : memref<8x32xbf16, #tpu.memory_space<vmem>>, vector<8x32xbf16>
    %c0_1 = arith.constant 0 : index
    %c0_2 = arith.constant 0 : index
    %1 = vector.load %arg2[%c0_1, %c0_2] : memref<32x128xbf16, #tpu.memory_space<vmem>>, vector<32x128xbf16>
    %cst = arith.constant dense<0.000000e+00> : vector<8x128xf32>
    %2 = tpu.matmul %0, %1, %cst {dimension_numbers = #tpu.dot_dimension_numbers<[1], [0], [0], [1], [0, 0, 1, 1], [], []>} : vector<8x32xbf16>, vector<32x128xbf16>, vector<8x128xf32> -> vector<8x128xf32>
    %c0_3 = arith.constant 0 : index
    %c0_4 = arith.constant 0 : index
    %3 = vector.load %arg3[%c0_3, %c0_4] : memref<1x128xf32, #tpu.memory_space<vmem>>, vector<1x128xf32>
    %4 = vector.broadcast %3 : vector<1x128xf32> to vector<8x128xf32>
    %5 = arith.addf %2, %4 : vector<8x128xf32>
    %6 = tpu.iota {dimensions = array<i32: 1>} : vector<8x128xi32>
    %c2_i32 = arith.constant 2 : i32
    %7 = vector.broadcast %c2_i32 : i32 to vector<8x128xi32>
    %8 = arith.cmpi slt, %6, %7 : vector<8x128xi32>
    %c2_i32_5 = arith.constant 2 : i32
    %9 = vector.broadcast %c2_i32_5 : i32 to vector<8x128xi32>
    %10 = arith.cmpi sge, %6, %9 : vector<8x128xi32>
    %c6_i32 = arith.constant 6 : i32
    %11 = vector.broadcast %c6_i32 : i32 to vector<8x128xi32>
    %12 = arith.cmpi slt, %6, %11 : vector<8x128xi32>
    %13 = arith.andi %10, %12 : vector<8x128xi1>
    %cst_6 = arith.constant 0xFF800000 : f32
    %14 = vector.broadcast %cst_6 : f32 to vector<8x128xf32>
    %15 = arith.select %8, %5, %14 : vector<8x128xi1>, vector<8x128xf32>
    %cst_7 = arith.constant dense<0xFF800000> : vector<8xf32>
    %16 = vector.multi_reduction <maximumf>, %15, %cst_7 [1] : vector<8x128xf32> to vector<8xf32>
    %17 = vector.shape_cast %16 : vector<8xf32> to vector<8x1xf32>
    %18 = vector.broadcast %17 : vector<8x1xf32> to vector<8x128xf32>
    %19 = arith.subf %5, %18 : vector<8x128xf32>
    %20 = arith.select %8, %19, %5 : vector<8x128xi1>, vector<8x128xf32>
    %21 = math.exp %20 : vector<8x128xf32>
    %cst_8 = arith.constant 0.000000e+00 : f32
    %22 = vector.broadcast %cst_8 : f32 to vector<8x128xf32>
    %23 = arith.select %8, %21, %22 : vector<8x128xi1>, vector<8x128xf32>
    %cst_9 = arith.constant dense<0.000000e+00> : vector<8xf32>
    %24 = vector.multi_reduction <add>, %23, %cst_9 [1] : vector<8x128xf32> to vector<8xf32>
    %25 = vector.shape_cast %24 : vector<8xf32> to vector<8x1xf32>
    %26 = tpu.reciprocal %25 {approx = true} : vector<8x1xf32> -> vector<8x1xf32>
    %27 = arith.mulf %25, %26 : vector<8x1xf32>
    %cst_10 = arith.constant 2.000000e+00 : f32
    %28 = vector.broadcast %cst_10 : f32 to vector<8x1xf32>
    %29 = arith.subf %28, %27 : vector<8x1xf32>
    %30 = arith.mulf %26, %29 : vector<8x1xf32>
    %31 = vector.broadcast %30 : vector<8x1xf32> to vector<8x128xf32>
    %32 = arith.mulf %21, %31 : vector<8x128xf32>
    %33 = arith.select %13, %21, %5 : vector<8x128xi1>, vector<8x128xf32>
    %34 = arith.select %8, %32, %33 : vector<8x128xi1>, vector<8x128xf32>
    %c0_11 = arith.constant 0 : index
    %c0_12 = arith.constant 0 : index
    %35 = vector.load %arg4[%c0_11, %c0_12] : memref<8x128xf32, #tpu.memory_space<vmem>>, vector<8x128xf32>
    tpu.vector_store %arg4[%c0_11, %c0_12], %34 {strides = array<i32>} : memref<8x128xf32, #tpu.memory_space<vmem>>, vector<8x128xf32>,
    return
  }
  func.func @transform_0(%arg0: i32) -> (i32, i32) {
    %c0_i32 = arith.constant 0 : i32
    %c0_i32_0 = arith.constant 0 : i32
    return %arg0, %c0_i32 : i32, i32
  }
  func.func @transform_1(%arg0: i32) -> (i32, i32) {
    %c0_i32 = arith.constant 0 : i32
    %c0_i32_0 = arith.constant 0 : i32
    %c0_i32_1 = arith.constant 0 : i32
    return %c0_i32, %c0_i32_0 : i32, i32
  }
  func.func @transform_2(%arg0: i32) -> (i32, i32) {
    %c0_i32 = arith.constant 0 : i32
    %c0_i32_0 = arith.constant 0 : i32
    %c0_i32_1 = arith.constant 0 : i32
    return %c0_i32, %c0_i32_0 : i32, i32
  }
  func.func @transform_3(%arg0: i32) -> (i32, i32) {
    %c0_i32 = arith.constant 0 : i32
    %c0_i32_0 = arith.constant 0 : i32
    return %arg0, %c0_i32 : i32, i32
  }
}

</mosaic_0001>

<llo_original>
// kernel: tpu_custom_call.1
$region0: #{tpu_custom_call.1}
  #allocation0 [shape = 'u32[]', space=smem, size = 0x4, offset = 0x4, fixed_abs, tag = 'smem constant byte address 0x4 - core index']
  #allocation1 [shape = 'u32[144,128]{1,0:T(1,128)}', space=vmem, size = 0x12000, scoped, tag = 'internal scratch']
  %s0 = inlined_call_operand.hbm [shape: bf16[8,32], index: 0, kind: input, shape index: {}]
  %s1 = inlined_call_operand.hbm [shape: bf16[32,128], index: 1, kind: input, shape index: {}]
  %s2 = inlined_call_operand.vmem [shape: f32[1,128], index: 2, kind: input, shape index: {}]
  %s3 = inlined_call_operand.hbm [shape: f32[8,128], index: 3, kind: output, shape index: {}]
  %s4 = sld [smem:[#allocation0]]
  $region30: #{tpu_custom_call.1} parent=0
    _
  %s6 = ssub.s32 1, %s4
  %s7 = scalar_select 0, %s6, %s4
  $region1: #{tpu_custom_call.1} parent=0
    #allocation2 [shape = 'u8[2048]{0}', space=vmem, size = 0x800, scoped, tag = 'input window, operand 0, single buffered']
    #allocation3 [shape = 's32[1]{0}', space=sflag, size = 0x4, scoped, tag = 'scoped memory for tpu_custom_call.1']
    #allocation4 [shape = 's32[1]{0}', space=sflag, size = 0x4, scoped, tag = 'scoped memory for tpu_custom_call.1']
    #allocation5 [shape = 'u8[8192]{0}', space=vmem, size = 0x2000, scoped, tag = 'input window, operand 1, single buffered']
    #allocation6 [shape = 's32[1]{0}', space=sflag, size = 0x4, scoped, tag = 'scoped memory for tpu_custom_call.1']
    #allocation7 [shape = 'u8[4096]{0}', space=vmem, size = 0x1000, scoped, tag = 'output window, operand 0, single buffered']
    %8 = vsyncpa [#allocation3], 0
    %9 = vsyncpa [#allocation6], 0
    %10 = vsyncpa [#allocation4], 0
    // Predicated region
    $region2: #{tpu_custom_call.1} parent=1 // pred_check
      _
    $region3: #{tpu_custom_call.1} parent=1 // pred_check_branch
      %12 = sbr.rel (0) target = $region5
    $region4: #{tpu_custom_call.1} parent=1 // pred_region
      %s14 = ssub.s32 64, 64
      %15 = vsyncadd [#allocation3], %s14
      %s17 = sshll.u32 [#allocation2], 4
      %s18 = int_to_ptr.vmem [resolvable:$true] %s17
      %20 = dma.hbm_to_vmem [thread:$0]  %s0, 64, %s18, [#allocation3]
    $region5: #{tpu_custom_call.1} parent=1 // pred_fallthru
      _
    // Predicated region
    $region6: #{tpu_custom_call.1} parent=1 // pred_check
      _
    $region7: #{tpu_custom_call.1} parent=1 // pred_check_branch
      %22 = sbr.rel (0) target = $region9
    $region8: #{tpu_custom_call.1} parent=1 // pred_region
      %s24 = ssub.s32 256, 256
      %25 = vsyncadd [#allocation6], %s24
      %s26 = sshll.u32 [#allocation5], 4
      %s27 = int_to_ptr.vmem [resolvable:$true] %s26
      %32 = dma.hbm_to_vmem [thread:$0]  %s1, 256, %s27, [#allocation6], 64, 64, 4
    $region9: #{tpu_custom_call.1} parent=1 // pred_fallthru
      _
    // Predicated region
    $region10: #{tpu_custom_call.1} parent=1 // pred_check
      _
    $region11: #{tpu_custom_call.1} parent=1 // pred_check_branch
      %34 = sbr.rel (0) target = $region13
    $region12: #{tpu_custom_call.1} parent=1 // pred_region
      _
    $region13: #{tpu_custom_call.1} parent=1 // pred_fallthru
      _
    // Predicated region
    $region14: #{tpu_custom_call.1} parent=1 // pred_check
      _
    $region15: #{tpu_custom_call.1} parent=1 // pred_check_branch
      %36 = sbr.rel (0) target = $region17
    $region16: #{tpu_custom_call.1} parent=1 // pred_region
      %37 = dma.done [#allocation3], 64
    $region17: #{tpu_custom_call.1} parent=1 // pred_fallthru
      _
    // Predicated region
    $region18: #{tpu_custom_call.1} parent=1 // pred_check
      _
    $region19: #{tpu_custom_call.1} parent=1 // pred_check_branch
      %39 = sbr.rel (0) target = $region21
    $region20: #{tpu_custom_call.1} parent=1 // pred_region
      %40 = dma.done [#allocation6], 256
    $region21: #{tpu_custom_call.1} parent=1 // pred_fallthru
      _
    %v42 = vld [vmem:[#allocation2] sm:$0xf]
    %v43 = vld [vmem:[#allocation5] sm:$0xf]
    %v44 = vld [vmem:[#allocation5 + $0x4] sm:$0xf]
    %v45 = vld [vmem:[#allocation5 + $0x8] sm:$0xf]
    %v46 = vld [vmem:[#allocation5 + $0xc] sm:$0xf]
    %v47 = vld [vmem:[%s2] sm:$0x1]
    %v49 = vlaneseq
    %v50 = vshrl.u32 %v49, 7
    %v51 = vsub.s32 0, %v50
    %v52 = vrot.slane %v47, %v51
    %v58 = vunpack.c.l.b16 %v43
    %v59 = vunpack.c.l.b16 %v44
    %v60 = vunpack.c.l.b16 %v45
    %v61 = vunpack.c.l.b16 %v46
    %v62 = vpack.c.b16 %v59, %v58
    %v63 = vpack.c.b16 %v61, %v60
    %vm66 = vcmask 261120
    %v68 = vsel %vm66, %v42, 0
    %70 = vmatprep.subr.bf16.mxu0 0
    %71 = vmatpush1.bf16.msra.mxu0 %v62
    %72 = vmatprep.subr.bf16.mxu0 0
    %73 = vmatpush1.bf16.msra.mxu0 %v63
    %74 = vmatprep.subr.bf16.mxu0 0
    %75 = vmatpush1.bf16.msra.mxu0 0
    %76 = vmatprep.subr.bf16.mxu0 0
    %77 = vmatpush1.bf16.msra.mxu0 0
    %78 = vmatprep.subr.bf16.mxu0 0
    %79 = vmatpush1.bf16.msra.mxu0 0
    %80 = vmatprep.subr.bf16.mxu0 0
    %81 = vmatpush1.bf16.msra.mxu0 0
    %82 = vmatprep.subr.bf16.mxu0 0
    %83 = vmatpush1.bf16.msra.mxu0 0
    %84 = vmatprep.subr.bf16.mxu0 0
    %85 = vmatpush1.bf16.msra.mxu0 0
    %86 = vmatprep.subr.bf16.mxu0 0
    %87 = vmatpush1.bf16.msra.mxu0 0
    %88 = vmatprep.subr.bf16.mxu0 0
    %89 = vmatpush1.bf16.msra.mxu0 0
    %90 = vmatprep.subr.bf16.mxu0 0
    %91 = vmatpush1.bf16.msra.mxu0 0
    %92 = vmatprep.subr.bf16.mxu0 0
    %93 = vmatpush1.bf16.msra.mxu0 0
    %94 = vmatprep.subr.bf16.mxu0 0
    %95 = vmatpush1.bf16.msra.mxu0 0
    %96 = vmatprep.subr.bf16.mxu0 0
    %97 = vmatpush1.bf16.msra.mxu0 0
    %98 = vmatprep.subr.bf16.mxu0 0
    %99 = vmatpush1.bf16.msra.mxu0 0
    %100 = vmatprep.subr.bf16.mxu0 0
    %101 = vmatpush1.bf16.msra.mxu0 0
    %102 = vmatprep.mubr.bf16.mxu0 0
    %103 = vmatmul.mubr.bf16.gmra.mrb[0].mxu0 %v68
    %v104 = vpop.f32.mrb[0].mxu0
    %v105 = vadd.f32 %v52, %v104
    %v106 = vpop.f32.mrb[0].mxu0
    %v107 = vpop.f32.mrb[0].mxu0
    %v108 = vpop.f32.mrb[0].mxu0
    %109 = vdwg.mxu0
    %v110 = vlaneseq
    %v111 = vand.u32 %v110, 127
    %vm112 = vcmp.lt.s32.totalorder %v111, 2
    %vm113 = vcmp.ge.s32.totalorder %v111, 2
    %vm114 = vcmp.lt.s32.totalorder %v111, 6
    %vm115 = vmand %vm113, %vm114
    %v116 = vsel %vm112, %v105, -inf
    %117 = vmax.xlane.f32.xlu0 %v116
    %v118 = vpop.xlane.xlu0 %117
    %v119 = vsub.f32 %v105, %v118
    %v120 = vsel %vm112, %v119, %v105
    %v121 = vmul.f32 %v120, 1.442695
    %v122 = vpow.pop %v121
    %v123 = vsel %vm112, %v122, 0.0
    %124 = vadd.xlane.f32.xlu0 %v123
    %v125 = vpop.xlane.xlu0 %124
    %v126 = vrcp.pop %v125
    %v127 = vmul.f32 %v125, %v126
    %v128 = vsub.f32 2.0, %v127
    %v129 = vmul.f32 %v126, %v128
    %v130 = vmul.f32 %v122, %v129
    %v131 = vsel %vm115, %v122, %v105
    %v132 = vsel %vm112, %v130, %v131
    %133 = vst [vmem:[#allocation7] sm:$0xff] %v132
    // Predicated region
    $region22: #{tpu_custom_call.1} parent=1 // pred_check
      _
    $region23: #{tpu_custom_call.1} parent=1 // pred_check_branch
      %135 = sbr.rel (0) target = $region25
    $region24: #{tpu_custom_call.1} parent=1 // pred_region
      %s137 = ssub.s32 128, 128
      %138 = vsyncadd [#allocation4], %s137
      %s140 = sshll.u32 [#allocation7], 4
      %s141 = int_to_ptr.vmem [resolvable:$true] %s140
      %143 = dma.vmem_to_hbm [thread:$0]  %s141, 128, %s3, [#allocation4]
    $region25: #{tpu_custom_call.1} parent=1 // pred_fallthru
      _
    // Predicated region
    $region26: #{tpu_custom_call.1} parent=1 // pred_check
      _
    $region27: #{tpu_custom_call.1} parent=1 // pred_check_branch
      %145 = sbr.rel (0) target = $region29
    $region28: #{tpu_custom_call.1} parent=1 // pred_region
      %146 = dma.done [#allocation4], 128
    $region29: #{tpu_custom_call.1} parent=1 // pred_fallthru
      _
    %147 = vsyncpa [#allocation3], 1
    %148 = vsyncpa [#allocation6], 1
    %149 = vsyncpa [#allocation4], 1

</llo_original>
